<compile_context>
chip_gen: v5e
topology: v5e:2x2
jax: 0.10.0
libtpu: 0.0.40
codegen_flags: <defaults>
</compile_context>

<pallas_src>
import functools

import jax
import jax.numpy as jnp
from jax import lax
from jax.experimental import pallas as pl
from jax.experimental.pallas import tpu as pltpu


def _round_up(x, m):
    return (x + m - 1) // m * m


def _pip_attack_eb_kernel(tgt_ref, user_ref, tbl_ref, out_ref, *, tile_m):
    """One (target-tile, M-slab) grid step.

    tgt_ref : (1, tile_n) int32  target-item ids (padded lanes hold -1)
    user_ref: (1, D)             user embedding (resident, same block every step)
    tbl_ref : (tile_m, D)        current M-slab of the item table (VMEM, pipelined)
    out_ref : (1, tile_n) f32    lane-dense score accumulator for this target tile
    """
    mt = pl.program_id(1)

    @pl.when(mt == 0)
    def _init():
        out_ref[...] = jnp.zeros_like(out_ref)

    tbl = tbl_ref[...]                              # (tile_m, D), native table dtype
    user = user_ref[...].astype(tbl.dtype)          # cast the single row DOWN, not the slab up

    # All-item scores for this slab on the MXU, f32 accumulation: (1, tile_m).
    slab_scores = lax.dot_general(
        user, tbl,
        dimension_numbers=(((1,), (1,)), ((), ())),
        preferred_element_type=jnp.float32,
    )

    # In-register gather of the target columns: one-hot select via a second
    # tiny MXU matmul (no per-row DMA, no cross-lane gather).
    ids = tgt_ref[...]                              # (1, tile_n) int32
    row_ids = mt * tile_m + lax.broadcasted_iota(
        jnp.int32, (tbl.shape[0], ids.shape[1]), 0)  # global row index per slab row
    sel = jnp.where(row_ids == ids, 1.0, 0.0).astype(jnp.float32)  # (tile_m, tile_n)

    out_ref[...] += lax.dot_general(
        slab_scores, sel,
        dimension_numbers=(((1,), (0,)), ((), ())),
        preferred_element_type=jnp.float32,
    )


def pip_attack_eb_scores(user_emb, items_table, target_items):
    """scores = sum(user_emb * items_table[target_items], dim=-1), fused gather."""
    m_item, d = items_table.shape
    assert user_emb.shape == (1, d)
    n = int(target_items.shape[0])

    # Target-axis tiling: output lane dim is always a multiple of 128 (unmasked
    # stores); grow to 512 lanes for large N to amortize per-step overhead.
    tile_n = min(512, _round_up(max(n, 1), 128))
    n_pad = _round_up(n, tile_n)
    # Padded lanes carry id -1 -> match nothing -> exact 0, sliced off at the end.
    tgt = jnp.full((1, n_pad), -1, jnp.int32).at[0, :n].set(
        target_items.astype(jnp.int32))

    # M-slab tiling of the item table through a normal VMEM BlockSpec.
    # 8 MiB per slab keeps the double-buffered table safely inside every
    # generation's VMEM (incl. v7x's 64 MiB physical / 32 MiB scoped).
    itemsize = jnp.dtype(items_table.dtype).itemsize
    slab_budget = 8 * 1024 * 1024
    if m_item * d * itemsize <= slab_budget:
        tile_m = m_item                       # whole table resident: ONE contiguous DMA
        m_pad = m_item
        table = items_table
    else:
        tile_m = max(8, (slab_budget // (d * itemsize)) // 8 * 8)
        m_pad = _round_up(m_item, tile_m)
        # Zero padding is safe: padded rows can never be selected (ids < m_item)
        # and contribute exactly 0 to the slab scores.
        table = jnp.zeros((m_pad, d), items_table.dtype).at[:m_item].set(items_table)

    n_tiles = n_pad // tile_n
    m_tiles = m_pad // tile_m

    vmem_limit = int(min(
        max(2 * tile_m * d * itemsize + (8 << 20), 16 << 20), 48 << 20))

    kernel = functools.partial(_pip_attack_eb_kernel, tile_m=tile_m)
    out = pl.pallas_call(
        kernel,
        out_shape=jax.ShapeDtypeStruct((1, n_pad), jnp.float32),
        grid_spec=pltpu.PrefetchScalarGridSpec(
            num_scalar_prefetch=0,
            grid=(n_tiles, m_tiles),                      # reduction (M) axis last
            in_specs=[
                pl.BlockSpec((1, tile_n), lambda nt, mt: (0, nt)),   # target ids
                pl.BlockSpec((1, d), lambda nt, mt: (0, 0)),         # user embedding
                pl.BlockSpec((tile_m, d), lambda nt, mt: (mt, 0)),   # table slab
            ],
            out_specs=pl.BlockSpec((1, tile_n), lambda nt, mt: (0, nt)),
        ),
        compiler_params=pltpu.CompilerParams(
            dimension_semantics=("parallel", "arbitrary"),
            vmem_limit_bytes=vmem_limit,
        ),
    )(tgt, user_emb, table)

    return out[0, :n]  # (N,), matching PyTorch's dim=-1 reduction result


def pip_attack_eb_forward(user_emb, items_emb):
    """Direct equivalent of PipAttackEB.forward(user_emb, items_emb)."""
    n = items_emb.shape[0]
    return pip_attack_eb_scores(user_emb, items_emb, jnp.arange(n, dtype=jnp.int32))


def reference_scores(user_emb, items_table, target_items):
    return jnp.sum(user_emb * items_table[target_items], axis=-1)


if __name__ == "__main__":
    key = jax.random.PRNGKey(0)
    k_user, k_items = jax.random.split(key)

    # Module config (synthetic): m_item=64 items of dim=32, 8 target items.
    m_item = 64
    dim = 32
    target_items = jnp.arange(8, dtype=jnp.int32)  # the module's self._target_

    # Deterministic parameter init (nn.Embedding(1, dim) weight ~ N(0, 1)).
    user_emb = jax.random.normal(k_user, (1, dim), dtype=jnp.float32)
    items_table = jax.random.normal(k_items, (m_item, dim), dtype=jnp.float32)

    scores = pip_attack_eb_scores(user_emb, items_table, target_items)
    scores = jax.block_until_ready(scores)

    ref = reference_scores(user_emb, items_table, target_items)
    assert scores.shape == (target_items.shape[0],)
    assert jnp.allclose(scores, ref, atol=1e-5, rtol=1e-5)

    # Direct forward(user_emb, items_emb) path, exactly as the module's forward.
    items_emb = items_table[target_items]
    fwd = jax.block_until_ready(pip_attack_eb_forward(user_emb, items_emb))
    assert jnp.allclose(fwd, ref, atol=1e-5, rtol=1e-5)

    # TODO(synk): train_/train_on_user_emb (BCELoss backward + SGD update of the
    # user embedding) are training glue with autograd, not a forward-pass kernel.
    print("KERNEL_OK")
</pallas_src>

<mosaic_0001>
module attributes {stable_mosaic.version = 11 : i64} {
  func.func @_pip_attack_eb_kernel(%arg0: i32, %arg1: i32, %arg2: memref<1x128xi32, #tpu.memory_space<vmem>>, %arg3: memref<1x32xf32, #tpu.memory_space<vmem>>, %arg4: memref<64x32xf32, #tpu.memory_space<vmem>>, %arg5: memref<1x128xf32, #tpu.memory_space<vmem>>) attributes {dimension_semantics = [#tpu.dimension_semantics<parallel>, #tpu.dimension_semantics<arbitrary>], iteration_bounds = array<i64: 1, 1>, scalar_prefetch = 0 : i64, scratch_operands = 0 : i64, tpu.core_type = #tpu.core_type<tc>, window_params = [{transform_indices = @transform_0, window_bounds = array<i64: 1, 128>}, {pipeline_mode = #tpu.pipeline_mode<synchronous>, transform_indices = @transform_1, window_bounds = array<i64: 1, 32>}, {transform_indices = @transform_2, window_bounds = array<i64: 64, 32>}, {transform_indices = @transform_3, window_bounds = array<i64: 1, 128>}]} {
    %c0_i32 = arith.constant 0 : i32
    %0 = arith.cmpi eq, %arg1, %c0_i32 : i32
    %1 = arith.extui %0 : i1 to i32
    %c0_i32_0 = arith.constant 0 : i32
    %2 = arith.cmpi ne, %1, %c0_i32_0 : i32
    scf.if %2 {
      %cst_13 = arith.constant 0.000000e+00 : f32
      %20 = vector.broadcast %cst_13 : f32 to vector<1x128xf32>
      %c0_14 = arith.constant 0 : index
      %c0_15 = arith.constant 0 : index
      %21 = vector.load %arg5[%c0_14, %c0_15] : memref<1x128xf32, #tpu.memory_space<vmem>>, vector<1x128xf32>
      tpu.vector_store %arg5[%c0_14, %c0_15], %20 {strides = array<i32>} : memref<1x128xf32, #tpu.memory_space<vmem>>, vector<1x128xf32>,
    } else {
    }
    %c0 = arith.constant 0 : index
    %c0_1 = arith.constant 0 : index
    %3 = vector.load %arg4[%c0, %c0_1] : memref<64x32xf32, #tpu.memory_space<vmem>>, vector<64x32xf32>
    %c0_2 = arith.constant 0 : index
    %c0_3 = arith.constant 0 : index
    %4 = vector.load %arg3[%c0_2, %c0_3] : memref<1x32xf32, #tpu.memory_space<vmem>>, vector<1x32xf32>
    %cst = arith.constant dense<0.000000e+00> : vector<1x64xf32>
    %5 = tpu.matmul %4, %3, %cst {dimension_numbers = #tpu.dot_dimension_numbers<[1], [1], [0], [0], [0, 0, 1, 0], [], []>} : vector<1x32xf32>, vector<64x32xf32>, vector<1x64xf32> -> vector<1x64xf32>
    %c0_4 = arith.constant 0 : index
    %c0_5 = arith.constant 0 : index
    %6 = vector.load %arg2[%c0_4, %c0_5] : memref<1x128xi32, #tpu.memory_space<vmem>>, vector<1x128xi32>
    %c64_i32 = arith.constant 64 : i32
    %7 = arith.muli %arg1, %c64_i32 : i32
    %8 = tpu.iota {dimensions = array<i32: 0>} : vector<64x128xi32>
    %9 = vector.broadcast %7 : i32 to vector<64x128xi32>
    %10 = arith.addi %9, %8 : vector<64x128xi32>
    %11 = vector.broadcast %6 : vector<1x128xi32> to vector<64x128xi32>
    %12 = arith.cmpi eq, %10, %11 : vector<64x128xi32>
    %cst_6 = arith.constant 1.000000e+00 : f32
    %cst_7 = arith.constant 0.000000e+00 : f32
    %13 = vector.broadcast %cst_6 : f32 to vector<64x128xf32>
    %14 = vector.broadcast %cst_7 : f32 to vector<64x128xf32>
    %15 = arith.select %12, %13, %14 : vector<64x128xi1>, vector<64x128xf32>
    %c0_8 = arith.constant 0 : index
    %c0_9 = arith.constant 0 : index
    %16 = vector.load %arg5[%c0_8, %c0_9] : memref<1x128xf32, #tpu.memory_space<vmem>>, vector<1x128xf32>
    %cst_10 = arith.constant dense<0.000000e+00> : vector<1x128xf32>
    %17 = tpu.matmul %5, %15, %cst_10 {dimension_numbers = #tpu.dot_dimension_numbers<[1], [0], [0], [1], [0, 0, 1, 1], [], []>} : vector<1x64xf32>, vector<64x128xf32>, vector<1x128xf32> -> vector<1x128xf32>
    %18 = arith.addf %16, %17 : vector<1x128xf32>
    %c0_11 = arith.constant 0 : index
    %c0_12 = arith.constant 0 : index
    %19 = vector.load %arg5[%c0_11, %c0_12] : memref<1x128xf32, #tpu.memory_space<vmem>>, vector<1x128xf32>
    tpu.vector_store %arg5[%c0_11, %c0_12], %18 {strides = array<i32>} : memref<1x128xf32, #tpu.memory_space<vmem>>, vector<1x128xf32>,
    return
  }
  func.func @transform_0(%arg0: i32, %arg1: i32) -> (i32, i32) {
    %c0_i32 = arith.constant 0 : i32
    %c0_i32_0 = arith.constant 0 : i32
    return %c0_i32, %arg0 : i32, i32
  }
  func.func @transform_1(%arg0: i32, %arg1: i32) -> (i32, i32) {
    %c0_i32 = arith.constant 0 : i32
    %c0_i32_0 = arith.constant 0 : i32
    %c0_i32_1 = arith.constant 0 : i32
    return %c0_i32, %c0_i32_0 : i32, i32
  }
  func.func @transform_2(%arg0: i32, %arg1: i32) -> (i32, i32) {
    %c0_i32 = arith.constant 0 : i32
    %c0_i32_0 = arith.constant 0 : i32
    return %arg1, %c0_i32 : i32, i32
  }
  func.func @transform_3(%arg0: i32, %arg1: i32) -> (i32, i32) {
    %c0_i32 = arith.constant 0 : i32
    %c0_i32_0 = arith.constant 0 : i32
    return %c0_i32, %arg0 : i32, i32
  }
}

</mosaic_0001>

<llo_original>
// kernel: tpu_custom_call.1
$region0: #{tpu_custom_call.1}
  #allocation0 [shape = 'u32[]', space=smem, size = 0x4, offset = 0x4, fixed_abs, tag = 'smem constant byte address 0x4 - core index']
  #allocation1 [shape = 'u32[72,128]{1,0:T(1,128)}', space=vmem, size = 0x9000, scoped, tag = 'internal scratch']
  %s0 = inlined_call_operand.vmem [shape: s32[1,128], index: 0, kind: input, shape index: {}]
  %s1 = inlined_call_operand.vmem [shape: f32[1,32], index: 1, kind: input, shape index: {}]
  %s2 = inlined_call_operand.vmem [shape: f32[64,32], index: 2, kind: input, shape index: {}]
  %s3 = inlined_call_operand.hbm [shape: f32[1,128], index: 3, kind: output, shape index: {}]
  %s4 = sld [smem:[#allocation0]]
  $region26: #{tpu_custom_call.1} parent=0
    _
  %s6 = ssub.s32 1, %s4
  %s7 = scalar_select 0, %s6, %s4
  $region1: #{tpu_custom_call.1} parent=0
    #allocation2 [shape = 'u8[512]{0}', space=vmem, size = 0x400, scoped, tag = 'output window, operand 0, single buffered']
    #allocation3 [shape = 's32[1]{0}', space=sflag, size = 0x4, scoped, tag = 'scoped memory for tpu_custom_call.1']
    %8 = vsyncpa [#allocation3], 0
    // Predicated region
    $region2: #{tpu_custom_call.1} parent=1 // pred_check
      _
    $region3: #{tpu_custom_call.1} parent=1 // pred_check_branch
      %10 = sbr.rel (0) target = $region5
    $region4: #{tpu_custom_call.1} parent=1 // pred_region
      _
    $region5: #{tpu_custom_call.1} parent=1 // pred_fallthru
      _
    // Predicated region
    $region6: #{tpu_custom_call.1} parent=1 // pred_check
      _
    $region7: #{tpu_custom_call.1} parent=1 // pred_check_branch
      %12 = sbr.rel (0) target = $region9
    $region8: #{tpu_custom_call.1} parent=1 // pred_region
      _
    $region9: #{tpu_custom_call.1} parent=1 // pred_fallthru
      _
    // Predicated region
    $region10: #{tpu_custom_call.1} parent=1 // pred_check
      _
    $region11: #{tpu_custom_call.1} parent=1 // pred_check_branch
      %14 = sbr.rel (0) target = $region13
    $region12: #{tpu_custom_call.1} parent=1 // pred_region
      _
    $region13: #{tpu_custom_call.1} parent=1 // pred_fallthru
      _
    %p15 = scmp.eq.s32.totalorder 0, 0
    // Predicated region
    $region14: #{tpu_custom_call.1} parent=1 // pred_check
      %p16 = pneg %p15
    $region15: #{tpu_custom_call.1} parent=1 // pred_check_branch
      %18 = sbr.rel (%p16) target = $region17
    $region16: #{tpu_custom_call.1} parent=1 // pred_region
      %19 = vst [vmem:[#allocation2] sm:$0x1] 0.0
    $region17: #{tpu_custom_call.1} parent=1 // pred_fallthru
      _
    %v20 = vld [vmem:[%s2] sm:$0xff]
    %v21 = vld [vmem:[%s2 + $0x8] sm:$0xff]
    %v22 = vld [vmem:[%s2 + $0x10] sm:$0xff]
    %v23 = vld [vmem:[%s2 + $0x18] sm:$0xff]
    %v24 = vld [vmem:[%s2 + $0x20] sm:$0xff]
    %v25 = vld [vmem:[%s2 + $0x28] sm:$0xff]
    %v26 = vld [vmem:[%s2 + $0x30] sm:$0xff]
    %v27 = vld [vmem:[%s2 + $0x38] sm:$0xff]
    %v28 = vld [vmem:[%s1] sm:$0x1]
    %vm29 = vcmask 261120
    %v31 = vsel %vm29, %v28, 0
    %v34 = vsel %vm29, %v20, 0
    %v37 = vsel %vm29, %v21, 0
    %v40 = vsel %vm29, %v22, 0
    %v43 = vsel %vm29, %v23, 0
    %v46 = vsel %vm29, %v24, 0
    %v49 = vsel %vm29, %v25, 0
    %v52 = vsel %vm29, %v26, 0
    %v55 = vsel %vm29, %v27, 0
    %57 = vmatpush.xpose.msra.mxu0 0.0
    %58 = vmatpush.xpose.msra.mxu0 0.0
    %59 = vmatpush.xpose.msra.mxu0 0.0
    %60 = vmatpush.xpose.msra.mxu0 0.0
    %61 = vmatpush.xpose.msra.mxu0 0.0
    %62 = vmatpush.xpose.msra.mxu0 0.0
    %63 = vmatpush.xpose.msra.mxu0 0.0
    %64 = vmatpush.xpose.msra.mxu0 0.0
    %65 = vmatpush.xpose.msra.mxu0 %v55
    %66 = vmatpush.xpose.msra.mxu0 %v52
    %67 = vmatpush.xpose.msra.mxu0 %v49
    %68 = vmatpush.xpose.msra.mxu0 %v46
    %69 = vmatpush.xpose.msra.mxu0 %v43
    %70 = vmatpush.xpose.msra.mxu0 %v40
    %71 = vmatpush.xpose.msra.mxu0 %v37
    %72 = vmatpush.xpose.msra.mxu0 %v34
    %73 = vmatmul.f32.gmra.mxu0 %v31
    %v74 = vpop.f32.mrf.mxu0
    %v75 = vadd.f32 0.0, %v74
    %76 = vdwg.mxu0
    %v77 = vld [vmem:[%s0] sm:$0x1]
    %s78 = smul.u32 0, 64
    %v79 = vlaneseq
    %v80 = vshrl.u32 %v79, 7
    %v81 = vadd.s32 %v80, 8
    %v82 = vadd.s32 %v80, 16
    %v83 = vadd.s32 %v80, 24
    %v84 = vadd.s32 %v80, 32
    %v85 = vadd.s32 %v80, 40
    %v86 = vadd.s32 %v80, 48
    %v87 = vadd.s32 %v80, 56
    %v88 = vstv %s78
    %v89 = vadd.s32 %v88, %v80
    %v90 = vadd.s32 %v88, %v81
    %v91 = vadd.s32 %v88, %v82
    %v92 = vadd.s32 %v88, %v83
    %v93 = vadd.s32 %v88, %v84
    %v94 = vadd.s32 %v88, %v85
    %v95 = vadd.s32 %v88, %v86
    %v96 = vadd.s32 %v88, %v87
    %v97 = vperm.slane %v77, 0
    %vm98 = vcmp.eq.s32.totalorder %v89, %v97
    %vm99 = vcmp.eq.s32.totalorder %v90, %v97
    %vm100 = vcmp.eq.s32.totalorder %v91, %v97
    %vm101 = vcmp.eq.s32.totalorder %v92, %v97
    %vm102 = vcmp.eq.s32.totalorder %v93, %v97
    %vm103 = vcmp.eq.s32.totalorder %v94, %v97
    %vm104 = vcmp.eq.s32.totalorder %v95, %v97
    %vm105 = vcmp.eq.s32.totalorder %v96, %v97
    %v106 = vsel %vm98, 1.0, 0.0
    %v107 = vsel %vm99, 1.0, 0.0
    %v108 = vsel %vm100, 1.0, 0.0
    %v109 = vsel %vm101, 1.0, 0.0
    %v110 = vsel %vm102, 1.0, 0.0
    %v111 = vsel %vm103, 1.0, 0.0
    %v112 = vsel %vm104, 1.0, 0.0
    %v113 = vsel %vm105, 1.0, 0.0
    %v114 = vld [vmem:[#allocation2] sm:$0x1]
    %vm115 = vcmask 523264
    %v117 = vsel %vm115, %v75, 0
    %119 = vmatpush.msra.mxu0 0.0
    %120 = vmatpush.msra.mxu0 0.0
    %121 = vmatpush.msra.mxu0 0.0
    %122 = vmatpush.msra.mxu0 0.0
    %123 = vmatpush.msra.mxu0 0.0
    %124 = vmatpush.msra.mxu0 0.0
    %125 = vmatpush.msra.mxu0 0.0
    %126 = vmatpush.msra.mxu0 0.0
    %127 = vmatpush.msra.mxu0 %v113
    %128 = vmatpush.msra.mxu0 %v112
    %129 = vmatpush.msra.mxu0 %v111
    %130 = vmatpush.msra.mxu0 %v110
    %131 = vmatpush.msra.mxu0 %v109
    %132 = vmatpush.msra.mxu0 %v108
    %133 = vmatpush.msra.mxu0 %v107
    %134 = vmatpush.msra.mxu0 %v106
    %135 = vmatmul.f32.gmra.mxu0 %v117
    %v136 = vpop.f32.mrf.mxu0
    %v137 = vadd.f32 0.0, %v136
    %138 = vdwg.mxu0
    %v139 = vadd.f32 %v114, %v137
    %140 = vst [vmem:[#allocation2] sm:$0x1] %v139
    // Predicated region
    $region18: #{tpu_custom_call.1} parent=1 // pred_check
      _
    $region19: #{tpu_custom_call.1} parent=1 // pred_check_branch
      %142 = sbr.rel (0) target = $region21
    $region20: #{tpu_custom_call.1} parent=1 // pred_region
      %144 = vsyncadd [#allocation3], 0
      %s146 = sshll.u32 [#allocation2], 4
      %s147 = int_to_ptr.vmem [resolvable:$true] %s146
      %s148 = sshll.u32 %s3, 4
      %s149 = int_to_ptr.hbm [resolvable:$true] %s148
      %151 = dma.vmem_to_hbm [thread:$0]  %s147, 16, %s149, [#allocation3]
    $region21: #{tpu_custom_call.1} parent=1 // pred_fallthru
      _
    // Predicated region
    $region22: #{tpu_custom_call.1} parent=1 // pred_check
      _
    $region23: #{tpu_custom_call.1} parent=1 // pred_check_branch
      %153 = sbr.rel (0) target = $region25
    $region24: #{tpu_custom_call.1} parent=1 // pred_region
      %155 = dma.done [#allocation3], 16
    $region25: #{tpu_custom_call.1} parent=1 // pred_fallthru
      _
    %156 = vsyncpa [#allocation3], 1

</llo_original>
